<compile_context>
chip_gen: v7x
topology: tpu7x:2x2x1
jax: 0.10.0
libtpu: 0.0.40
codegen_flags: <defaults>
</compile_context>

<pallas_src>
import jax
import jax.numpy as jnp
from jax.experimental import pallas as pl
from jax.experimental.pallas import tpu as pltpu

H1 = 256          # first hidden width
H2 = 64           # second hidden width (logical)
H2_PAD = 128      # second hidden width padded to a full lane register
OUT = 1


def _round_up(n, m):
    return ((n + m - 1) // m) * m


def _mlp_kernel(x_ref, w1_ref, b1_ref, w2_ref, b2_ref, w3_ref, b3_ref, o_ref):
    # Layer 1: [T, D] @ [D, 256] on the MXU.  x arrives f32; the bf16 cast runs on
    # the VPU and hides under the matmul.
    x_bf = x_ref[...].astype(jnp.bfloat16)
    h1 = jnp.dot(x_bf, w1_ref[...], preferred_element_type=jnp.float32)
    h1 = jnp.maximum(h1 + b1_ref[...], 0.0)                  # f32 bias + ReLU (VPU)

    # Layer 2: [T, 256] @ [256, 128] (64 real cols + 64 zero-padded) on the MXU.
    h2 = jnp.dot(h1.astype(w2_ref.dtype), w2_ref[...],
                 preferred_element_type=jnp.float32)
    h2 = jnp.maximum(h2 + b2_ref[...], 0.0)                  # f32 bias + ReLU (VPU)

    # Layer 3: 128 -> 1 computed lane-dense: contract the 128-lane dim of h2
    # against w3 [1, 128], landing as a [1, T] row -> full-lane output stores.
    y = jax.lax.dot_general(
        w3_ref[...], h2,
        dimension_numbers=(((1,), (1,)), ((), ())),
        preferred_element_type=jnp.float32)                   # [1, T]
    o_ref[...] = (y + b3_ref[...]).astype(o_ref.dtype)


def prepare_params(params):
    """One-time transform of raw (pre-transposed) params into the kernel layout:
    bf16 matmul weights, hidden width zero-padded 64 -> 128, w3 as a f32 row."""
    w1 = params["w1"].astype(jnp.bfloat16)                       # [D, 256] bf16
    b1 = params["b1"].reshape(1, H1).astype(jnp.float32)         # [1, 256] f32

    w2 = jnp.zeros((H1, H2_PAD), jnp.float32)
    w2 = w2.at[:, :H2].set(params["w2"]).astype(jnp.bfloat16)    # [256, 128] bf16
    b2 = jnp.zeros((1, H2_PAD), jnp.float32)
    b2 = b2.at[:, :H2].set(params["b2"].reshape(1, H2))          # [1, 128] f32

    w3 = jnp.zeros((1, H2_PAD), jnp.float32)
    w3 = w3.at[:, :H2].set(params["w3"].reshape(1, H2))          # [1, 128] f32
    b3 = params["b3"].reshape(1, 1).astype(jnp.float32)          # [1, 1]   f32
    return {"w1": w1, "b1": b1, "w2": w2, "b2": b2, "w3": w3, "b3": b3}


def surface_model_forward(x, prepared, *, batch_tile=None):
    """3-layer MLP forward fully inside one fused Pallas kernel.

    x: [B, input_dim] float array (streamed into the kernel in f32, one HBM pass).
    prepared: output of prepare_params().
    """
    B, D = x.shape
    if x.dtype != jnp.float32:
        x = x.astype(jnp.float32)

    # ---- batch-tile selection ----------------------------------------------
    if batch_tile is None:
        batch_tile = 2048                      # amortize ~0.35 us per-grid-step overhead
    batch_tile = max(128, _round_up(batch_tile, 128))
    # Never pad a small batch up to a huge tile.
    batch_tile = min(batch_tile, _round_up(B, 128))
    # v7x megacore: keep >= 2 grid steps when the batch allows, so the "parallel"
    # axis shards across both TensorCores (no effect on 1-TC v5e/v6e).
    if B > 128:
        batch_tile = min(batch_tile, _round_up(pl.cdiv(B, 2), 128))
    # Per-row VMEM footprint: double-buffered f32 x, in-kernel bf16 x copy,
    # h1 f32, h1 bf16 copy, h2 f32, double-buffered f32 output row.
    bytes_per_row = (2 * 4 * D) + (2 * D) + (4 * H1) + (2 * H1) + (4 * H2_PAD) + (2 * 4)
    tile_budget = 16 * 1024 * 1024             # tile-dependent VMEM ceiling
    max_rows = max(128, (tile_budget // bytes_per_row) // 128 * 128)
    batch_tile = min(batch_tile, max_rows)

    num_tiles = pl.cdiv(B, batch_tile)

    w1, b1 = prepared["w1"], prepared["b1"]
    w2, b2 = prepared["w2"], prepared["b2"]
    w3, b3 = prepared["w3"], prepared["b3"]

    # Weights/biases: whole-array blocks with constant index maps -> fetched into
    # VMEM once.  Large constants (big input_dim) skip double-buffering since they
    # never re-fetch.
    def const_spec(arr):
        nbytes = int(arr.size) * arr.dtype.itemsize
        if nbytes >= (512 * 1024):
            return (pl.BlockSpec(arr.shape, lambda i: (0, 0),
                                 pipeline_mode=pl.Buffered(1)), nbytes)
        return (pl.BlockSpec(arr.shape, lambda i: (0, 0)), 2 * nbytes)

    consts = [const_spec(a) for a in (w1, b1, w2, b2, w3, b3)]
    const_specs = [s for s, _ in consts]
    const_bytes = sum(n for _, n in consts)

    # vmem_limit_bytes from the real buffer sizes with ~2x headroom; capped well
    # below v7x's 64 MiB physical VMEM.
    tile_bytes = batch_tile * bytes_per_row
    vmem_limit = int(min(48 * 1024 * 1024,
                         max(8 * 1024 * 1024, 2 * (tile_bytes + const_bytes))))

    # Lane-dense output: each grid step writes one full (1, batch_tile) lane span.
    # The ragged batch tail only produces garbage in unused lanes of the last span
    # (rows are independent); it is sliced off below.
    out = pl.pallas_call(
        _mlp_kernel,
        out_shape=jax.ShapeDtypeStruct((1, num_tiles * batch_tile), jnp.float32),
        grid_spec=pltpu.PrefetchScalarGridSpec(
            num_scalar_prefetch=0,
            grid=(num_tiles,),
            in_specs=[
                pl.BlockSpec((batch_tile, D), lambda i: (i, 0)),   # x (batch-tiled)
                *const_specs,
            ],
            out_specs=pl.BlockSpec((1, batch_tile), lambda i: (0, i)),
        ),
        compiler_params=pltpu.CompilerParams(
            dimension_semantics=("parallel",),
            vmem_limit_bytes=vmem_limit,
        ),
    )(x, w1, b1, w2, b2, w3, b3)

    return out.reshape(-1)[:B].reshape(B, OUT)


def init_params(key, input_dim):
    """Deterministic synthetic init (PyTorch Linear shapes, stored transposed)."""
    k = jax.random.split(key, 6)
    scale = lambda fan_in: 1.0 / jnp.sqrt(jnp.float32(fan_in))
    return {
        "w1": jax.random.uniform(k[0], (input_dim, H1), jnp.float32, -1, 1) * scale(input_dim),
        "b1": jax.random.uniform(k[1], (1, H1), jnp.float32, -1, 1) * scale(input_dim),
        "w2": jax.random.uniform(k[2], (H1, H2), jnp.float32, -1, 1) * scale(H1),
        "b2": jax.random.uniform(k[3], (1, H2), jnp.float32, -1, 1) * scale(H1),
        "w3": jax.random.uniform(k[4], (H2, OUT), jnp.float32, -1, 1) * scale(H2),
        "b3": jax.random.uniform(k[5], (1, OUT), jnp.float32, -1, 1) * scale(H2),
    }


def _reference(x, params):
    """Pure-JAX reference mirroring the kernel's bf16 rounding points."""
    f32 = jnp.float32
    xb = x.astype(jnp.bfloat16).astype(f32)
    w1 = params["w1"].astype(jnp.bfloat16).astype(f32)
    w2 = params["w2"].astype(jnp.bfloat16).astype(f32)
    h1 = jnp.maximum(xb @ w1 + params["b1"], 0.0)
    h1 = h1.astype(jnp.bfloat16).astype(f32)
    h2 = jnp.maximum(h1 @ w2 + params["b2"], 0.0)
    return h2 @ params["w3"] + params["b3"]


if __name__ == "__main__":
    key = jax.random.PRNGKey(0)
    k_x, k_p = jax.random.split(key)

    batch, input_dim = 8, 32
    x = jax.random.normal(k_x, (batch, input_dim), jnp.float32)
    params = init_params(k_p, input_dim)
    prepared = prepare_params(params)

    out = surface_model_forward(x, prepared)
    out = jax.block_until_ready(out)

    ref = _reference(x, params)
    assert out.shape == (batch, 1)
    err = float(jnp.max(jnp.abs(out - ref)))
    assert jnp.allclose(out, ref, atol=1e-2, rtol=1e-2), err

    print("KERNEL_OK")
</pallas_src>

<mosaic_0001>
module attributes {stable_mosaic.version = 11 : i64} {
  func.func @_mlp_kernel(%arg0: i32, %arg1: memref<128x32xf32, #tpu.memory_space<vmem>>, %arg2: memref<32x256xbf16, #tpu.memory_space<vmem>>, %arg3: memref<1x256xf32, #tpu.memory_space<vmem>>, %arg4: memref<256x128xbf16, #tpu.memory_space<vmem>>, %arg5: memref<1x128xf32, #tpu.memory_space<vmem>>, %arg6: memref<1x128xf32, #tpu.memory_space<vmem>>, %arg7: memref<1x1xf32, #tpu.memory_space<vmem>>, %arg8: memref<1x128xf32, #tpu.memory_space<vmem>>) attributes {dimension_semantics = [#tpu.dimension_semantics<parallel>], iteration_bounds = array<i64: 1>, scalar_prefetch = 0 : i64, scratch_operands = 0 : i64, tpu.core_type = #tpu.core_type<tc>, window_params = [{transform_indices = @transform_0, window_bounds = array<i64: 128, 32>}, {pipeline_mode = #tpu.pipeline_mode<synchronous>, transform_indices = @transform_1, window_bounds = array<i64: 32, 256>}, {pipeline_mode = #tpu.pipeline_mode<synchronous>, transform_indices = @transform_2, window_bounds = array<i64: 1, 256>}, {pipeline_mode = #tpu.pipeline_mode<synchronous>, transform_indices = @transform_3, window_bounds = array<i64: 256, 128>}, {pipeline_mode = #tpu.pipeline_mode<synchronous>, transform_indices = @transform_4, window_bounds = array<i64: 1, 128>}, {pipeline_mode = #tpu.pipeline_mode<synchronous>, transform_indices = @transform_5, window_bounds = array<i64: 1, 128>}, {pipeline_mode = #tpu.pipeline_mode<synchronous>, transform_indices = @transform_6, window_bounds = array<i64: 1, 1>}, {transform_indices = @transform_7, window_bounds = array<i64: 1, 128>}]} {
    %c0 = arith.constant 0 : index
    %c0_0 = arith.constant 0 : index
    %0 = vector.load %arg1[%c0, %c0_0] : memref<128x32xf32, #tpu.memory_space<vmem>>, vector<128x32xf32>
    %1 = arith.truncf %0 : vector<128x32xf32> to vector<128x32xbf16>
    %c0_1 = arith.constant 0 : index
    %c0_2 = arith.constant 0 : index
    %2 = vector.load %arg2[%c0_1, %c0_2] : memref<32x256xbf16, #tpu.memory_space<vmem>>, vector<32x256xbf16>
    %cst = arith.constant dense<0.000000e+00> : vector<128x256xf32>
    %3 = tpu.matmul %1, %2, %cst {dimension_numbers = #tpu.dot_dimension_numbers<[1], [0], [0], [1], [0, 0, 1, 1], [], []>} : vector<128x32xbf16>, vector<32x256xbf16>, vector<128x256xf32> -> vector<128x256xf32>
    %c0_3 = arith.constant 0 : index
    %c0_4 = arith.constant 0 : index
    %4 = vector.load %arg3[%c0_3, %c0_4] : memref<1x256xf32, #tpu.memory_space<vmem>>, vector<1x256xf32>
    %5 = vector.broadcast %4 : vector<1x256xf32> to vector<128x256xf32>
    %6 = arith.addf %3, %5 : vector<128x256xf32>
    %cst_5 = arith.constant 0.000000e+00 : f32
    %7 = vector.broadcast %cst_5 : f32 to vector<128x256xf32>
    %8 = arith.maximumf %6, %7 : vector<128x256xf32>
    %9 = arith.truncf %8 : vector<128x256xf32> to vector<128x256xbf16>
    %c0_6 = arith.constant 0 : index
    %c0_7 = arith.constant 0 : index
    %10 = vector.load %arg4[%c0_6, %c0_7] : memref<256x128xbf16, #tpu.memory_space<vmem>>, vector<256x128xbf16>
    %cst_8 = arith.constant dense<0.000000e+00> : vector<128x128xf32>
    %11 = tpu.matmul %9, %10, %cst_8 {dimension_numbers = #tpu.dot_dimension_numbers<[1], [0], [0], [1], [0, 0, 1, 1], [], []>} : vector<128x256xbf16>, vector<256x128xbf16>, vector<128x128xf32> -> vector<128x128xf32>
    %c0_9 = arith.constant 0 : index
    %c0_10 = arith.constant 0 : index
    %12 = vector.load %arg5[%c0_9, %c0_10] : memref<1x128xf32, #tpu.memory_space<vmem>>, vector<1x128xf32>
    %13 = vector.broadcast %12 : vector<1x128xf32> to vector<128x128xf32>
    %14 = arith.addf %11, %13 : vector<128x128xf32>
    %cst_11 = arith.constant 0.000000e+00 : f32
    %15 = vector.broadcast %cst_11 : f32 to vector<128x128xf32>
    %16 = arith.maximumf %14, %15 : vector<128x128xf32>
    %c0_12 = arith.constant 0 : index
    %c0_13 = arith.constant 0 : index
    %17 = vector.load %arg6[%c0_12, %c0_13] : memref<1x128xf32, #tpu.memory_space<vmem>>, vector<1x128xf32>
    %cst_14 = arith.constant dense<0.000000e+00> : vector<1x128xf32>
    %18 = tpu.matmul %17, %16, %cst_14 {dimension_numbers = #tpu.dot_dimension_numbers<[1], [1], [0], [0], [0, 0, 1, 0], [], []>} : vector<1x128xf32>, vector<128x128xf32>, vector<1x128xf32> -> vector<1x128xf32>
    %c0_15 = arith.constant 0 : index
    %c0_16 = arith.constant 0 : index
    %19 = vector.load %arg7[%c0_15, %c0_16] : memref<1x1xf32, #tpu.memory_space<vmem>>, vector<1x1xf32>
    %20 = vector.broadcast %19 : vector<1x1xf32> to vector<1x128xf32>
    %21 = arith.addf %18, %20 : vector<1x128xf32>
    %c0_17 = arith.constant 0 : index
    %c0_18 = arith.constant 0 : index
    %22 = vector.load %arg8[%c0_17, %c0_18] : memref<1x128xf32, #tpu.memory_space<vmem>>, vector<1x128xf32>
    tpu.vector_store %arg8[%c0_17, %c0_18], %21 {strides = array<i32>} : memref<1x128xf32, #tpu.memory_space<vmem>>, vector<1x128xf32>,
    return
  }
  func.func @transform_0(%arg0: i32) -> (i32, i32) {
    %c0_i32 = arith.constant 0 : i32
    %c0_i32_0 = arith.constant 0 : i32
    return %arg0, %c0_i32 : i32, i32
  }
  func.func @transform_1(%arg0: i32) -> (i32, i32) {
    %c0_i32 = arith.constant 0 : i32
    %c0_i32_0 = arith.constant 0 : i32
    %c0_i32_1 = arith.constant 0 : i32
    return %c0_i32, %c0_i32_0 : i32, i32
  }
  func.func @transform_2(%arg0: i32) -> (i32, i32) {
    %c0_i32 = arith.constant 0 : i32
    %c0_i32_0 = arith.constant 0 : i32
    %c0_i32_1 = arith.constant 0 : i32
    return %c0_i32, %c0_i32_0 : i32, i32
  }
  func.func @transform_3(%arg0: i32) -> (i32, i32) {
    %c0_i32 = arith.constant 0 : i32
    %c0_i32_0 = arith.constant 0 : i32
    %c0_i32_1 = arith.constant 0 : i32
    return %c0_i32, %c0_i32_0 : i32, i32
  }
  func.func @transform_4(%arg0: i32) -> (i32, i32) {
    %c0_i32 = arith.constant 0 : i32
    %c0_i32_0 = arith.constant 0 : i32
    %c0_i32_1 = arith.constant 0 : i32
    return %c0_i32, %c0_i32_0 : i32, i32
  }
  func.func @transform_5(%arg0: i32) -> (i32, i32) {
    %c0_i32 = arith.constant 0 : i32
    %c0_i32_0 = arith.constant 0 : i32
    %c0_i32_1 = arith.constant 0 : i32
    return %c0_i32, %c0_i32_0 : i32, i32
  }
  func.func @transform_6(%arg0: i32) -> (i32, i32) {
    %c0_i32 = arith.constant 0 : i32
    %c0_i32_0 = arith.constant 0 : i32
    %c0_i32_1 = arith.constant 0 : i32
    return %c0_i32, %c0_i32_0 : i32, i32
  }
  func.func @transform_7(%arg0: i32) -> (i32, i32) {
    %c0_i32 = arith.constant 0 : i32
    %c0_i32_0 = arith.constant 0 : i32
    return %c0_i32, %arg0 : i32, i32
  }
}

</mosaic_0001>

<llo_original>
// kernel: tpu_custom_call.1
$region0: #{tpu_custom_call.1}
  #allocation0 [shape = 'u32[]', space=smem, size = 0x4, offset = 0x4, fixed_abs, tag = 'smem constant byte address 0x4 - core index']
  #allocation1 [shape = 'u32[144,128]{1,0:T(1,128)}', space=vmem, size = 0x12000, scoped, tag = 'internal scratch']
  #allocation2 [shape = 'f32[1,1]{1,0:T(1,128)S(1)}', space=vmem, size = 0x200, scoped, tag = 'scoped memory for tpu_custom_call.1']
  %s0 = inlined_call_operand.hbm [shape: f32[8,32], index: 0, kind: input, shape index: {}]
  %s1 = inlined_call_operand.hbm [shape: bf16[32,256], index: 1, kind: input, shape index: {}]
  %s2 = inlined_call_operand.vmem [shape: f32[1,256], index: 2, kind: input, shape index: {}]
  %s3 = inlined_call_operand.hbm [shape: bf16[256,128], index: 3, kind: input, shape index: {}]
  %s4 = inlined_call_operand.vmem [shape: f32[1,128], index: 4, kind: input, shape index: {}]
  %s5 = inlined_call_operand.vmem [shape: f32[1,128], index: 5, kind: input, shape index: {}]
  %s6 = inlined_call_operand.<no memory space> [shape: f32[1,1], index: 6, kind: input, shape index: {}]
  %s7 = inlined_call_operand.hbm [shape: f32[1,128], index: 7, kind: output, shape index: {}]
  %s8 = sld [smem:[#allocation0]]
  $region50: #{tpu_custom_call.1} parent=0
    _
  %s10 = ssub.s32 1, %s8
  %s11 = scalar_select 0, %s10, %s8
  %v12 = vstv %s6
  %13 = vst [vmem:[#allocation2] sm:$0x1] %v12
  $region1: #{tpu_custom_call.1} parent=0
    #allocation3 [shape = 'u8[65536]{0}', space=vmem, size = 0x10000, scoped, tag = 'input window, operand 0, single buffered']
    #allocation4 [shape = 's32[1]{0}', space=sflag, size = 0x4, scoped, tag = 'scoped memory for tpu_custom_call.1']
    #allocation5 [shape = 's32[1]{0}', space=sflag, size = 0x4, scoped, tag = 'scoped memory for tpu_custom_call.1']
    #allocation6 [shape = 'u8[16384]{0}', space=vmem, size = 0x4000, scoped, tag = 'input window, operand 1, single buffered']
    #allocation7 [shape = 's32[1]{0}', space=sflag, size = 0x4, scoped, tag = 'scoped memory for tpu_custom_call.1']
    #allocation8 [shape = 'u8[65536]{0}', space=vmem, size = 0x10000, scoped, tag = 'input window, operand 3, single buffered']
    #allocation9 [shape = 'u8[512]{0}', space=vmem, size = 0x400, scoped, tag = 'output window, operand 0, single buffered']
    %14 = vsyncpa [#allocation4], 0
    %15 = vsyncpa [#allocation7], 0
    %16 = vsyncpa [#allocation5], 0
    // Predicated region
    $region2: #{tpu_custom_call.1} parent=1 // pred_check
      _
    $region3: #{tpu_custom_call.1} parent=1 // pred_check_branch
      %18 = sbr.rel (0) target = $region5
    $region4: #{tpu_custom_call.1} parent=1 // pred_region
      %s20 = ssub.s32 2048, 128
      %21 = vsyncadd [#allocation4], %s20
      %s22 = sshll.u32 [#allocation3], 4
      %s23 = int_to_ptr.vmem [resolvable:$true] %s22
      %28 = dma.hbm_to_vmem [thread:$0]  %s0, 128, %s23, [#allocation4], 128, 128, 8
    $region5: #{tpu_custom_call.1} parent=1 // pred_fallthru
      _
    // Predicated region
    $region6: #{tpu_custom_call.1} parent=1 // pred_check
      _
    $region7: #{tpu_custom_call.1} parent=1 // pred_check_branch
      %30 = sbr.rel (0) target = $region9
    $region8: #{tpu_custom_call.1} parent=1 // pred_region
      %s32 = ssub.s32 512, 512
      %33 = vsyncadd [#allocation7], %s32
      %s34 = sshll.u32 [#allocation6], 4
      %s35 = int_to_ptr.vmem [resolvable:$true] %s34
      %40 = dma.hbm_to_vmem [thread:$0]  %s1, 512, %s35, [#allocation7], 128, 128, 8
    $region9: #{tpu_custom_call.1} parent=1 // pred_fallthru
      _
    // Predicated region
    $region10: #{tpu_custom_call.1} parent=1 // pred_check
      _
    $region11: #{tpu_custom_call.1} parent=1 // pred_check_branch
      %42 = sbr.rel (0) target = $region13
    $region12: #{tpu_custom_call.1} parent=1 // pred_region
      _
    $region13: #{tpu_custom_call.1} parent=1 // pred_fallthru
      _
    // Predicated region
    $region14: #{tpu_custom_call.1} parent=1 // pred_check
      _
    $region15: #{tpu_custom_call.1} parent=1 // pred_check_branch
      %44 = sbr.rel (0) target = $region17
    $region16: #{tpu_custom_call.1} parent=1 // pred_region
      %s46 = ssub.s32 2048, 2048
      %47 = vsyncadd [#allocation7], %s46
      %s48 = sshll.u32 [#allocation8], 4
      %s49 = int_to_ptr.vmem [resolvable:$true] %s48
      %54 = dma.hbm_to_vmem [thread:$0]  %s3, 2048, %s49, [#allocation7], 64, 64, 4
    $region17: #{tpu_custom_call.1} parent=1 // pred_fallthru
      _
    // Predicated region
    $region18: #{tpu_custom_call.1} parent=1 // pred_check
      _
    $region19: #{tpu_custom_call.1} parent=1 // pred_check_branch
      %56 = sbr.rel (0) target = $region21
    $region20: #{tpu_custom_call.1} parent=1 // pred_region
      _
    $region21: #{tpu_custom_call.1} parent=1 // pred_fallthru
      _
    // Predicated region
    $region22: #{tpu_custom_call.1} parent=1 // pred_check
      _
    $region23: #{tpu_custom_call.1} parent=1 // pred_check_branch
      %58 = sbr.rel (0) target = $region25
    $region24: #{tpu_custom_call.1} parent=1 // pred_region
      _
    $region25: #{tpu_custom_call.1} parent=1 // pred_fallthru
      _
    // Predicated region
    $region26: #{tpu_custom_call.1} parent=1 // pred_check
      _
    $region27: #{tpu_custom_call.1} parent=1 // pred_check_branch
      %60 = sbr.rel (0) target = $region29
    $region28: #{tpu_custom_call.1} parent=1 // pred_region
      _
    $region29: #{tpu_custom_call.1} parent=1 // pred_fallthru
      _
    // Predicated region
    $region30: #{tpu_custom_call.1} parent=1 // pred_check
      _
    $region31: #{tpu_custom_call.1} parent=1 // pred_check_branch
      %62 = sbr.rel (0) target = $region33
    $region32: #{tpu_custom_call.1} parent=1 // pred_region
      %63 = dma.done [#allocation4], 2048
    $region33: #{tpu_custom_call.1} parent=1 // pred_fallthru
      _
    // Predicated region
    $region34: #{tpu_custom_call.1} parent=1 // pred_check
      _
    $region35: #{tpu_custom_call.1} parent=1 // pred_check_branch
      %65 = sbr.rel (0) target = $region37
    $region36: #{tpu_custom_call.1} parent=1 // pred_region
      %66 = dma.done [#allocation7], 512
    $region37: #{tpu_custom_call.1} parent=1 // pred_fallthru
      _
    // Predicated region
    $region38: #{tpu_custom_call.1} parent=1 // pred_check
      _
    $region39: #{tpu_custom_call.1} parent=1 // pred_check_branch
      %68 = sbr.rel (0) target = $region41
    $region40: #{tpu_custom_call.1} parent=1 // pred_region
      %69 = dma.done [#allocation7], 2048
    $region41: #{tpu_custom_call.1} parent=1 // pred_fallthru
      _
    %v71 = vld [vmem:[#allocation3] sm:$0xff]
    %v72 = vld [vmem:[#allocation3 + $0x8] sm:$0xff]
    %v73 = vld [vmem:[#allocation3 + $0x10] sm:$0xff]
    %v74 = vld [vmem:[#allocation3 + $0x18] sm:$0xff]
    %v75 = vld [vmem:[#allocation3 + $0x20] sm:$0xff]
    %v76 = vld [vmem:[#allocation3 + $0x28] sm:$0xff]
    %v77 = vld [vmem:[#allocation3 + $0x30] sm:$0xff]
    %v78 = vld [vmem:[#allocation3 + $0x38] sm:$0xff]
    %v79 = vld [vmem:[#allocation3 + $0x40] sm:$0xff]
    %v80 = vld [vmem:[#allocation3 + $0x48] sm:$0xff]
    %v81 = vld [vmem:[#allocation3 + $0x50] sm:$0xff]
    %v82 = vld [vmem:[#allocation3 + $0x58] sm:$0xff]
    %v83 = vld [vmem:[#allocation3 + $0x60] sm:$0xff]
    %v84 = vld [vmem:[#allocation3 + $0x68] sm:$0xff]
    %v85 = vld [vmem:[#allocation3 + $0x70] sm:$0xff]
    %v86 = vld [vmem:[#allocation3 + $0x78] sm:$0xff]
    %v87 = vpack.c.bf16 %v72, %v71
    %v88 = vpack.c.bf16 %v74, %v73
    %v89 = vpack.c.bf16 %v76, %v75
    %v90 = vpack.c.bf16 %v78, %v77
    %v91 = vpack.c.bf16 %v80, %v79
    %v92 = vpack.c.bf16 %v82, %v81
    %v93 = vpack.c.bf16 %v84, %v83
    %v94 = vpack.c.bf16 %v86, %v85
    %v95 = vld [vmem:[#allocation6] sm:$0xff]
    %v96 = vld [vmem:[#allocation6 + $0x8] sm:$0xff]
    %v97 = vld [vmem:[#allocation6 + $0x10] sm:$0xff]
    %v98 = vld [vmem:[#allocation6 + $0x18] sm:$0xff]
    %v99 = vld [vmem:[%s2] sm:$0x3]
    %v101 = vlaneseq
    %v102 = vshrl.u32 %v101, 7
    %v103 = vsub.s32 0, %v102
    %v104 = vrot.slane %v99, %v103
    %v105 = vlaneseq
    %v106 = vshrl.u32 %v105, 7
    %v107 = vsub.s32 1, %v106
    %v108 = vrot.slane %v99, %v107
    %v115 = vunpack.c.l.b16 %v95
    %v116 = vunpack.c.h.b16 %v95
    %v117 = vunpack.c.l.b16 %v96
    %v118 = vunpack.c.h.b16 %v96
    %v119 = vunpack.c.l.b16 %v97
    %v120 = vunpack.c.h.b16 %v97
    %v121 = vunpack.c.l.b16 %v98
    %v122 = vunpack.c.h.b16 %v98
    %v123 = vpack.c.b16 %v117, %v115
    %v124 = vpack.c.b16 %v118, %v116
    %v125 = vpack.c.b16 %v121, %v119
    %v126 = vpack.c.b16 %v122, %v120
    %vm131 = vcmask 261120
    %v133 = vsel %vm131, %v87, 0
    %v136 = vsel %vm131, %v88, 0
    %v139 = vsel %vm131, %v89, 0
    %v142 = vsel %vm131, %v90, 0
    %v145 = vsel %vm131, %v91, 0
    %v148 = vsel %vm131, %v92, 0
    %v151 = vsel %vm131, %v93, 0
    %v154 = vsel %vm131, %v94, 0
    %156 = vmatprep.subr.bf16.mxu0 %v124
    %157 = vmatpush1.bf16.msra.mxu0 %v123
    %158 = vmatprep.subr.bf16.mxu0 %v126
    %159 = vmatpush1.bf16.msra.mxu0 %v125
    %160 = vmatprep.subr.bf16.mxu0 0
    %161 = vmatpush1.bf16.msra.mxu0 0
    %162 = vmatprep.subr.bf16.mxu0 0
    %163 = vmatpush1.bf16.msra.mxu0 0
    %164 = vmatprep.subr.bf16.mxu0 0
    %165 = vmatpush1.bf16.msra.mxu0 0
    %166 = vmatprep.subr.bf16.mxu0 0
    %167 = vmatpush1.bf16.msra.mxu0 0
    %168 = vmatprep.subr.bf16.mxu0 0
    %169 = vmatpush1.bf16.msra.mxu0 0
    %170 = vmatprep.subr.bf16.mxu0 0
    %171 = vmatpush1.bf16.msra.mxu0 0
    %172 = vmatprep.subr.bf16.mxu0 0
    %173 = vmatpush1.bf16.msra.mxu0 0
    %174 = vmatprep.subr.bf16.mxu0 0
    %175 = vmatpush1.bf16.msra.mxu0 0
    %176 = vmatprep.subr.bf16.mxu0 0
    %177 = vmatpush1.bf16.msra.mxu0 0
    %178 = vmatprep.subr.bf16.mxu0 0
    %179 = vmatpush1.bf16.msra.mxu0 0
    %180 = vmatprep.subr.bf16.mxu0 0
    %181 = vmatpush1.bf16.msra.mxu0 0
    %182 = vmatprep.subr.bf16.mxu0 0
    %183 = vmatpush1.bf16.msra.mxu0 0
    %184 = vmatprep.subr.bf16.mxu0 0
    %185 = vmatpush1.bf16.msra.mxu0 0
    %186 = vmatprep.subr.bf16.mxu0 0
    %187 = vmatpush1.bf16.msra.mxu0 0
    %188 = vmatprep.mubr.bf16.mxu0 0
    %189 = vmatmul.mubr.bf16.gmra.mrb[0].mxu0 %v133
    %v190 = vpop.f32.mrb[0].mxu0
    %v191 = vadd.f32 %v104, %v190
    %v192 = vpop.f32.mrb[0].mxu0
    %v193 = vadd.f32 %v108, %v192
    %v194 = vpop.f32.mrb[0].mxu0
    %v195 = vadd.f32 %v104, %v194
    %v196 = vpop.f32.mrb[0].mxu0
    %v197 = vadd.f32 %v108, %v196
    %198 = vmatprep.mubr.bf16.mxu0 0
    %199 = vmatmul.mubr.bf16.gmra.mrb[0].mxu0 %v136
    %v200 = vpop.f32.mrb[0].mxu0
    %v201 = vadd.f32 %v104, %v200
    %v202 = vpop.f32.mrb[0].mxu0
    %v203 = vadd.f32 %v108, %v202
    %v204 = vpop.f32.mrb[0].mxu0
    %v205 = vadd.f32 %v104, %v204
    %v206 = vpop.f32.mrb[0].mxu0
    %v207 = vadd.f32 %v108, %v206
    %208 = vmatprep.mubr.bf16.mxu0 0
    %209 = vmatmul.mubr.bf16.gmra.mrb[0].mxu0 %v139
    %v210 = vpop.f32.mrb[0].mxu0
    %v211 = vadd.f32 %v104, %v210
    %v212 = vpop.f32.mrb[0].mxu0
    %v213 = vadd.f32 %v108, %v212
    %v214 = vpop.f32.mrb[0].mxu0
    %v215 = vadd.f32 %v104, %v214
    %v216 = vpop.f32.mrb[0].mxu0
    %v217 = vadd.f32 %v108, %v216
    %218 = vmatprep.mubr.bf16.mxu0 0
    %219 = vmatmul.mubr.bf16.gmra.mrb[0].mxu0 %v142
    %v220 = vpop.f32.mrb[0].mxu0
    %v221 = vadd.f32 %v104, %v220
    %v222 = vpop.f32.mrb[0].mxu0
    %v223 = vadd.f32 %v108, %v222
    %v224 = vpop.f32.mrb[0].mxu0
    %v225 = vadd.f32 %v104, %v224
    %v226 = vpop.f32.mrb[0].mxu0
    %v227 = vadd.f32 %v108, %v226
    %228 = vmatprep.mubr.bf16.mxu0 0
    %229 = vmatmul.mubr.bf16.gmra.mrb[0].mxu0 %v145
    %v230 = vpop.f32.mrb[0].mxu0
    %v231 = vadd.f32 %v104, %v230
    %v232 = vpop.f32.mrb[0].mxu0
    %v233 = vadd.f32 %v108, %v232
    %v234 = vpop.f32.mrb[0].mxu0
    %v235 = vadd.f32 %v104, %v234
    %v236 = vpop.f32.mrb[0].mxu0
    %v237 = vadd.f32 %v108, %v236
    %238 = vmatprep.mubr.bf16.mxu0 0
    %239 = vmatmul.mubr.bf16.gmra.mrb[0].mxu0 %v148
    %v240 = vpop.f32.mrb[0].mxu0
    %v241 = vadd.f32 %v104, %v240
    %v242 = vpop.f32.mrb[0].mxu0
    %v243 = vadd.f32 %v108, %v242
    %v244 = vpop.f32.mrb[0].mxu0
    %v245 = vadd.f32 %v104, %v244
    %v246 = vpop.f32.mrb[0].mxu0
    %v247 = vadd.f32 %v108, %v246
    %248 = vmatprep.mubr.bf16.mxu0 0
    %249 = vmatmul.mubr.bf16.gmra.mrb[0].mxu0 %v151
    %v250 = vpop.f32.mrb[0].mxu0
    %v251 = vadd.f32 %v104, %v250
    %v252 = vpop.f32.mrb[0].mxu0
    %v253 = vadd.f32 %v108, %v252
    %v254 = vpop.f32.mrb[0].mxu0
    %v255 = vadd.f32 %v104, %v254
    %v256 = vpop.f32.mrb[0].mxu0
    %v257 = vadd.f32 %v108, %v256
    %258 = vmatprep.mubr.bf16.mxu0 0
    %259 = vmatmul.mubr.bf16.gmra.mrb[0].mxu0 %v154
    %v260 = vpop.f32.mrb[0].mxu0
    %v261 = vadd.f32 %v104, %v260
    %v262 = vpop.f32.mrb[0].mxu0
    %v263 = vadd.f32 %v108, %v262
    %v264 = vpop.f32.mrb[0].mxu0
    %v265 = vadd.f32 %v104, %v264
    %v266 = vpop.f32.mrb[0].mxu0
    %v267 = vadd.f32 %v108, %v266
    %268 = vdwg.mxu0
    %v269 = vmax.f32 %v191, 0.0
    %v270 = vmax.f32 %v193, 0.0
    %v271 = vmax.f32 %v195, 0.0
    %v272 = vmax.f32 %v197, 0.0
    %v273 = vmax.f32 %v201, 0.0
    %v274 = vmax.f32 %v203, 0.0
    %v275 = vmax.f32 %v205, 0.0
    %v276 = vmax.f32 %v207, 0.0
    %v277 = vmax.f32 %v211, 0.0
    %v278 = vmax.f32 %v213, 0.0
    %v279 = vmax.f32 %v215, 0.0
    %v280 = vmax.f32 %v217, 0.0
    %v281 = vmax.f32 %v221, 0.0
    %v282 = vmax.f32 %v223, 0.0
    %v283 = vmax.f32 %v225, 0.0
    %v284 = vmax.f32 %v227, 0.0
    %v285 = vmax.f32 %v231, 0.0
    %v286 = vmax.f32 %v233, 0.0
    %v287 = vmax.f32 %v235, 0.0
    %v288 = vmax.f32 %v237, 0.0
    %v289 = vmax.f32 %v241, 0.0
    %v290 = vmax.f32 %v243, 0.0
    %v291 = vmax.f32 %v245, 0.0
    %v292 = vmax.f32 %v247, 0.0
    %v293 = vmax.f32 %v251, 0.0
    %v294 = vmax.f32 %v253, 0.0
    %v295 = vmax.f32 %v255, 0.0
    %v296 = vmax.f32 %v257, 0.0
    %v297 = vmax.f32 %v261, 0.0
    %v298 = vmax.f32 %v263, 0.0
    %v299 = vmax.f32 %v265, 0.0
    %v300 = vmax.f32 %v267, 0.0
    %v301 = vpack.c.bf16 %v271, %v269
    %v302 = vpack.c.bf16 %v272, %v270
    %v303 = vpack.c.bf16 %v275, %v273
    %v304 = vpack.c.bf16 %v276, %v274
    %v305 = vpack.c.bf16 %v279, %v277
    %v306 = vpack.c.bf16 %v280, %v278
    %v307 = vpack.c.bf16 %v283, %v281
    %v308 = vpack.c.bf16 %v284, %v282
    %v309 = vpack.c.bf16 %v287, %v285
    %v310 = vpack.c.bf16 %v288, %v286
    %v311 = vpack.c.bf16 %v291, %v289
    %v312 = vpack.c.bf16 %v292, %v290
    %v313 = vpack.c.bf16 %v295, %v293
    %v314 = vpack.c.bf16 %v296, %v294
    %v315 = vpack.c.bf16 %v299, %v297
    %v316 = vpack.c.bf16 %v300, %v298
    %v317 = vld [vmem:[#allocation8] sm:$0xf]
    %v318 = vld [vmem:[#allocation8 + $0x4] sm:$0xf]
    %v319 = vld [vmem:[#allocation8 + $0x8] sm:$0xf]
    %v320 = vld [vmem:[#allocation8 + $0xc] sm:$0xf]
    %v321 = vld [vmem:[#allocation8 + $0x10] sm:$0xf]
    %v322 = vld [vmem:[#allocation8 + $0x14] sm:$0xf]
    %v323 = vld [vmem:[#allocation8 + $0x18] sm:$0xf]
    %v324 = vld [vmem:[#allocation8 + $0x1c] sm:$0xf]
    %v325 = vld [vmem:[#allocation8 + $0x20] sm:$0xf]
    %v326 = vld [vmem:[#allocation8 + $0x24] sm:$0xf]
    %v327 = vld [vmem:[#allocation8 + $0x28] sm:$0xf]
    %v328 = vld [vmem:[#allocation8 + $0x2c] sm:$0xf]
    %v329 = vld [vmem:[#allocation8 + $0x30] sm:$0xf]
    %v330 = vld [vmem:[#allocation8 + $0x34] sm:$0xf]
    %v331 = vld [vmem:[#allocation8 + $0x38] sm:$0xf]
    %v332 = vld [vmem:[#allocation8 + $0x3c] sm:$0xf]
    %v333 = vld [vmem:[#allocation8 + $0x40] sm:$0xf]
    %v334 = vld [vmem:[#allocation8 + $0x44] sm:$0xf]
    %v335 = vld [vmem:[#allocation8 + $0x48] sm:$0xf]
    %v336 = vld [vmem:[#allocation8 + $0x4c] sm:$0xf]
    %v337 = vld [vmem:[#allocation8 + $0x50] sm:$0xf]
    %v338 = vld [vmem:[#allocation8 + $0x54] sm:$0xf]
    %v339 = vld [vmem:[#allocation8 + $0x58] sm:$0xf]
    %v340 = vld [vmem:[#allocation8 + $0x5c] sm:$0xf]
    %v341 = vld [vmem:[#allocation8 + $0x60] sm:$0xf]
    %v342 = vld [vmem:[#allocation8 + $0x64] sm:$0xf]
    %v343 = vld [vmem:[#allocation8 + $0x68] sm:$0xf]
    %v344 = vld [vmem:[#allocation8 + $0x6c] sm:$0xf]
    %v345 = vld [vmem:[#allocation8 + $0x70] sm:$0xf]
    %v346 = vld [vmem:[#allocation8 + $0x74] sm:$0xf]
    %v347 = vld [vmem:[#allocation8 + $0x78] sm:$0xf]
    %v348 = vld [vmem:[#allocation8 + $0x7c] sm:$0xf]
    %v349 = vld [vmem:[%s4] sm:$0x1]
    %v351 = vlaneseq
    %v352 = vshrl.u32 %v351, 7
    %v353 = vsub.s32 0, %v352
    %v354 = vrot.slane %v349, %v353
    %v388 = vunpack.c.l.b16 %v317
    %v389 = vunpack.c.l.b16 %v318
    %v390 = vunpack.c.l.b16 %v319
    %v391 = vunpack.c.l.b16 %v320
    %v392 = vunpack.c.l.b16 %v321
    %v393 = vunpack.c.l.b16 %v322
    %v394 = vunpack.c.l.b16 %v323
    %v395 = vunpack.c.l.b16 %v324
    %v396 = vunpack.c.l.b16 %v325
    %v397 = vunpack.c.l.b16 %v326
    %v398 = vunpack.c.l.b16 %v327
    %v399 = vunpack.c.l.b16 %v328
    %v400 = vunpack.c.l.b16 %v329
    %v401 = vunpack.c.l.b16 %v330
    %v402 = vunpack.c.l.b16 %v331
    %v403 = vunpack.c.l.b16 %v332
    %v404 = vunpack.c.l.b16 %v333
    %v405 = vunpack.c.l.b16 %v334
    %v406 = vunpack.c.l.b16 %v335
    %v407 = vunpack.c.l.b16 %v336
    %v408 = vunpack.c.l.b16 %v337
    %v409 = vunpack.c.l.b16 %v338
    %v410 = vunpack.c.l.b16 %v339
    %v411 = vunpack.c.l.b16 %v340
    %v412 = vunpack.c.l.b16 %v341
    %v413 = vunpack.c.l.b16 %v342
    %v414 = vunpack.c.l.b16 %v343
    %v415 = vunpack.c.l.b16 %v344
    %v416 = vunpack.c.l.b16 %v345
    %v417 = vunpack.c.l.b16 %v346
    %v418 = vunpack.c.l.b16 %v347
    %v419 = vunpack.c.l.b16 %v348
    %v420 = vpack.c.b16 %v389, %v388
    %v421 = vpack.c.b16 %v391, %v390
    %v422 = vpack.c.b16 %v393, %v392
    %v423 = vpack.c.b16 %v395, %v394
    %v424 = vpack.c.b16 %v397, %v396
    %v425 = vpack.c.b16 %v399, %v398
    %v426 = vpack.c.b16 %v401, %v400
    %v427 = vpack.c.b16 %v403, %v402
    %v428 = vpack.c.b16 %v405, %v404
    %v429 = vpack.c.b16 %v407, %v406
    %v430 = vpack.c.b16 %v409, %v408
    %v431 = vpack.c.b16 %v411, %v410
    %v432 = vpack.c.b16 %v413, %v412
    %v433 = vpack.c.b16 %v415, %v414
    %v434 = vpack.c.b16 %v417, %v416
    %v435 = vpack.c.b16 %v419, %v418
    %452 = vmatprep.subr.bf16.mxu0 0
    %453 = vmatpush1.bf16.msra.mxu0 %v420
    %454 = vmatprep.subr.bf16.mxu0 0
    %455 = vmatpush1.bf16.msra.mxu0 %v421
    %456 = vmatprep.subr.bf16.mxu0 0
    %457 = vmatpush1.bf16.msra.mxu0 %v422
    %458 = vmatprep.subr.bf16.mxu0 0
    %459 = vmatpush1.bf16.msra.mxu0 %v423
    %460 = vmatprep.subr.bf16.mxu0 0
    %461 = vmatpush1.bf16.msra.mxu0 %v424
    %462 = vmatprep.subr.bf16.mxu0 0
    %463 = vmatpush1.bf16.msra.mxu0 %v425
    %464 = vmatprep.subr.bf16.mxu0 0
    %465 = vmatpush1.bf16.msra.mxu0 %v426
    %466 = vmatprep.subr.bf16.mxu0 0
    %467 = vmatpush1.bf16.msra.mxu0 %v427
    %468 = vmatprep.subr.bf16.mxu0 0
    %469 = vmatpush1.bf16.msra.mxu0 %v428
    %470 = vmatprep.subr.bf16.mxu0 0
    %471 = vmatpush1.bf16.msra.mxu0 %v429
    %472 = vmatprep.subr.bf16.mxu0 0
    %473 = vmatpush1.bf16.msra.mxu0 %v430
    %474 = vmatprep.subr.bf16.mxu0 0
    %475 = vmatpush1.bf16.msra.mxu0 %v431
    %476 = vmatprep.subr.bf16.mxu0 0
    %477 = vmatpush1.bf16.msra.mxu0 %v432
    %478 = vmatprep.subr.bf16.mxu0 0
    %479 = vmatpush1.bf16.msra.mxu0 %v433
    %480 = vmatprep.subr.bf16.mxu0 0
    %481 = vmatpush1.bf16.msra.mxu0 %v434
    %482 = vmatprep.subr.bf16.mxu0 0
    %483 = vmatpush1.bf16.msra.mxu0 %v435
    %484 = vmatprep.mubr.bf16.mxu0 %v302
    %485 = vmatmul.mubr.bf16.gmra.mrb[0].mxu0 %v301
    %v486 = vpop.f32.mrb[0].mxu0
    %v487 = vadd.f32 %v354, %v486
    %v488 = vpop.f32.mrb[0].mxu0
    %v489 = vpop.f32.mrb[0].mxu0
    %v490 = vadd.f32 %v354, %v489
    %v491 = vpop.f32.mrb[0].mxu0
    %492 = vmatprep.mubr.bf16.mxu0 %v304
    %493 = vmatmul.mubr.bf16.gmra.mrb[0].mxu0 %v303
    %v494 = vpop.f32.mrb[0].mxu0
    %v495 = vadd.f32 %v354, %v494
    %v496 = vpop.f32.mrb[0].mxu0
    %v497 = vpop.f32.mrb[0].mxu0
    %v498 = vadd.f32 %v354, %v497
    %v499 = vpop.f32.mrb[0].mxu0
    %500 = vmatprep.mubr.bf16.mxu0 %v306
    %501 = vmatmul.mubr.bf16.gmra.mrb[0].mxu0 %v305
    %v502 = vpop.f32.mrb[0].mxu0
    %v503 = vadd.f32 %v354, %v502
    %v504 = vpop.f32.mrb[0].mxu0
    %v505 = vpop.f32.mrb[0].mxu0
    %v506 = vadd.f32 %v354, %v505
    %v507 = vpop.f32.mrb[0].mxu0
    %508 = vmatprep.mubr.bf16.mxu0 %v308
    %509 = vmatmul.mubr.bf16.gmra.mrb[0].mxu0 %v307
    %v510 = vpop.f32.mrb[0].mxu0
    %v511 = vadd.f32 %v354, %v510
    %v512 = vpop.f32.mrb[0].mxu0
    %v513 = vpop.f32.mrb[0].mxu0
    %v514 = vadd.f32 %v354, %v513
    %v515 = vpop.f32.mrb[0].mxu0
    %516 = vmatprep.mubr.bf16.mxu0 %v310
    %517 = vmatmul.mubr.bf16.gmra.mrb[0].mxu0 %v309
    %v518 = vpop.f32.mrb[0].mxu0
    %v519 = vadd.f32 %v354, %v518
    %v520 = vpop.f32.mrb[0].mxu0
    %v521 = vpop.f32.mrb[0].mxu0
    %v522 = vadd.f32 %v354, %v521
    %v523 = vpop.f32.mrb[0].mxu0
    %524 = vmatprep.mubr.bf16.mxu0 %v312
    %525 = vmatmul.mubr.bf16.gmra.mrb[0].mxu0 %v311
    %v526 = vpop.f32.mrb[0].mxu0
    %v527 = vadd.f32 %v354, %v526
    %v528 = vpop.f32.mrb[0].mxu0
    %v529 = vpop.f32.mrb[0].mxu0
    %v530 = vadd.f32 %v354, %v529
    %v531 = vpop.f32.mrb[0].mxu0
    %532 = vmatprep.mubr.bf16.mxu0 %v314
    %533 = vmatmul.mubr.bf16.gmra.mrb[0].mxu0 %v313
    %v534 = vpop.f32.mrb[0].mxu0
    %v535 = vadd.f32 %v354, %v534
    %v536 = vpop.f32.mrb[0].mxu0
    %v537 = vpop.f32.mrb[0].mxu0
    %v538 = vadd.f32 %v354, %v537
    %v539 = vpop.f32.mrb[0].mxu0
    %540 = vmatprep.mubr.bf16.mxu0 %v316
    %541 = vmatmul.mubr.bf16.gmra.mrb[0].mxu0 %v315
    %v542 = vpop.f32.mrb[0].mxu0
    %v543 = vadd.f32 %v354, %v542
    %v544 = vpop.f32.mrb[0].mxu0
    %v545 = vpop.f32.mrb[0].mxu0
    %v546 = vadd.f32 %v354, %v545
    %v547 = vpop.f32.mrb[0].mxu0
    %548 = vdwg.mxu0
    %v549 = vmax.f32 %v487, 0.0
    %v550 = vmax.f32 %v490, 0.0
    %v551 = vmax.f32 %v495, 0.0
    %v552 = vmax.f32 %v498, 0.0
    %v553 = vmax.f32 %v503, 0.0
    %v554 = vmax.f32 %v506, 0.0
    %v555 = vmax.f32 %v511, 0.0
    %v556 = vmax.f32 %v514, 0.0
    %v557 = vmax.f32 %v519, 0.0
    %v558 = vmax.f32 %v522, 0.0
    %v559 = vmax.f32 %v527, 0.0
    %v560 = vmax.f32 %v530, 0.0
    %v561 = vmax.f32 %v535, 0.0
    %v562 = vmax.f32 %v538, 0.0
    %v563 = vmax.f32 %v543, 0.0
    %v564 = vmax.f32 %v546, 0.0
    %v565 = vld [vmem:[%s5] sm:$0x1]
    %v566 = vld [vmem:[#allocation2] sm:$0x1]
    %568 = vset.pattern.permute.xlu0 0
    %569 = vperm.xlu0 %568, %v566
    %v570 = vpop.permute.xlu0 %569
    %v572 = vlaneseq
    %v573 = vshrl.u32 %v572, 7
    %v574 = vsub.s32 0, %v573
    %v575 = vrot.slane %v570, %v574
    %576 = vmatprep.subr.mxu0 0.0
    %577 = vmatpush1.xpose.msra.mxu0 %v549
    %578 = vmatprep.subr.mxu0 0.0
    %579 = vmatpush1.xpose.msra.mxu0 %v550
    %580 = vmatprep.subr.mxu0 0.0
    %581 = vmatpush1.xpose.msra.mxu0 %v551
    %582 = vmatprep.subr.mxu0 0.0
    %583 = vmatpush1.xpose.msra.mxu0 %v552
    %584 = vmatprep.subr.mxu0 0.0
    %585 = vmatpush1.xpose.msra.mxu0 %v553
    %586 = vmatprep.subr.mxu0 0.0
    %587 = vmatpush1.xpose.msra.mxu0 %v554
    %588 = vmatprep.subr.mxu0 0.0
    %589 = vmatpush1.xpose.msra.mxu0 %v555
    %590 = vmatprep.subr.mxu0 0.0
    %591 = vmatpush1.xpose.msra.mxu0 %v556
    %592 = vmatprep.subr.mxu0 0.0
    %593 = vmatpush1.xpose.msra.mxu0 %v557
    %594 = vmatprep.subr.mxu0 0.0
    %595 = vmatpush1.xpose.msra.mxu0 %v558
    %596 = vmatprep.subr.mxu0 0.0
    %597 = vmatpush1.xpose.msra.mxu0 %v559
    %598 = vmatprep.subr.mxu0 0.0
    %599 = vmatpush1.xpose.msra.mxu0 %v560
    %600 = vmatprep.subr.mxu0 0.0
    %601 = vmatpush1.xpose.msra.mxu0 %v561
    %602 = vmatprep.subr.mxu0 0.0
    %603 = vmatpush1.xpose.msra.mxu0 %v562
    %604 = vmatprep.subr.mxu0 0.0
    %605 = vmatpush1.xpose.msra.mxu0 %v563
    %606 = vmatprep.subr.mxu0 0.0
    %607 = vmatpush1.xpose.msra.mxu0 %v564
    %608 = vmatprep.subr.mxu0 0.0
    %609 = vmatpush1.xpose.msra.mxu0 0.0
    %610 = vmatprep.subr.mxu0 0.0
    %611 = vmatpush1.xpose.msra.mxu0 0.0
    %612 = vmatprep.subr.mxu0 0.0
    %613 = vmatpush1.xpose.msra.mxu0 0.0
    %614 = vmatprep.subr.mxu0 0.0
    %615 = vmatpush1.xpose.msra.mxu0 0.0
    %616 = vmatprep.subr.mxu0 0.0
    %617 = vmatpush1.xpose.msra.mxu0 0.0
    %618 = vmatprep.subr.mxu0 0.0
    %619 = vmatpush1.xpose.msra.mxu0 0.0
    %620 = vmatprep.subr.mxu0 0.0
    %621 = vmatpush1.xpose.msra.mxu0 0.0
    %622 = vmatprep.subr.mxu0 0.0
    %623 = vmatpush1.xpose.msra.mxu0 0.0
    %624 = vmatprep.subr.mxu0 0.0
    %625 = vmatpush1.xpose.msra.mxu0 0.0
    %626 = vmatprep.subr.mxu0 0.0
    %627 = vmatpush1.xpose.msra.mxu0 0.0
    %628 = vmatprep.subr.mxu0 0.0
    %629 = vmatpush1.xpose.msra.mxu0 0.0
    %630 = vmatprep.subr.mxu0 0.0
    %631 = vmatpush1.xpose.msra.mxu0 0.0
    %632 = vmatprep.subr.mxu0 0.0
    %633 = vmatpush1.xpose.msra.mxu0 0.0
    %634 = vmatprep.subr.mxu0 0.0
    %635 = vmatpush1.xpose.msra.mxu0 0.0
    %636 = vmatprep.subr.mxu0 0.0
    %637 = vmatpush1.xpose.msra.mxu0 0.0
    %638 = vmatprep.subr.mxu0 0.0
    %639 = vmatpush1.xpose.msra.mxu0 0.0
    %640 = vmatprep.mubr.f32.mxu0 0.0
    %641 = vmatmul.mubr.f32.gmra.mrb[0].mxu0 %v565
    %v642 = vpop.f32.mrb[0].mxu0
    %v643 = vadd.f32 %v575, %v642
    %v644 = vpop.f32.mrb[0].mxu0
    %645 = vdwg.mxu0
    %646 = vst [vmem:[#allocation9] sm:$0x1] %v643
    // Predicated region
    $region42: #{tpu_custom_call.1} parent=1 // pred_check
      _
    $region43: #{tpu_custom_call.1} parent=1 // pred_check_branch
      %648 = sbr.rel (0) target = $region45
    $region44: #{tpu_custom_call.1} parent=1 // pred_region
      %s650 = ssub.s32 16, 16
      %651 = vsyncadd [#allocation5], %s650
      %s653 = sshll.u32 [#allocation9], 4
      %s654 = int_to_ptr.vmem [resolvable:$true] %s653
      %656 = dma.vmem_to_hbm [thread:$0]  %s654, 16, %s7, [#allocation5]
    $region45: #{tpu_custom_call.1} parent=1 // pred_fallthru
      _
    // Predicated region
    $region46: #{tpu_custom_call.1} parent=1 // pred_check
      _
    $region47: #{tpu_custom_call.1} parent=1 // pred_check_branch
      %658 = sbr.rel (0) target = $region49
    $region48: #{tpu_custom_call.1} parent=1 // pred_region
      %659 = dma.done [#allocation5], 16
    $region49: #{tpu_custom_call.1} parent=1 // pred_fallthru
      _
    %660 = vsyncpa [#allocation4], 1
    %661 = vsyncpa [#allocation7], 1
    %662 = vsyncpa [#allocation5], 1

</llo_original>
